<compile_context>
chip_gen: v6e
topology: v6e:2x2x1
jax: 0.10.0
libtpu: 0.0.40
codegen_flags: <defaults>
</compile_context>

<pallas_src>
import math

import jax
import jax.numpy as jnp
from jax import lax
from jax.experimental import pallas as pl
from jax.experimental.pallas import tpu as pltpu

_INV_SQRT2 = 1.0 / math.sqrt(2.0)

# Set True to move the activation onto the EUP (tanh approx, separate VLIW
# slot) once the kernel is compute-bound; slight numeric delta vs nn.GELU().
_USE_TANH_GELU = False


def _gelu(x):
    if _USE_TANH_GELU:
        return jax.nn.gelu(x, approximate=True)
    # PyTorch nn.GELU() default: 0.5 * x * (1 + erf(x / sqrt(2))), in f32.
    return 0.5 * x * (1.0 + lax.erf(x * _INV_SQRT2))


# --------------- Path A: weight-resident (weights live in VMEM once) --------

def _mlp_kernel_resident(x_ref, w1_ref, w2_ref, o_ref):
    # x_ref : (tm, C) input dtype; cast to bf16 here (hidden under MXU work)
    # w1_ref: (C, H)  bf16, full array, VMEM-resident (DMA'd once, 1 buffer)
    # w2_ref: (H, C)  bf16, full array, VMEM-resident
    # o_ref : (tm, C) output dtype
    xb = x_ref[...].astype(jnp.bfloat16)
    h = jnp.dot(xb, w1_ref[...], preferred_element_type=jnp.float32)
    h = _gelu(h)
    o_ref[...] = jnp.dot(h.astype(jnp.bfloat16), w2_ref[...],
                         preferred_element_type=jnp.float32).astype(o_ref.dtype)
    # Dropout is identity in eval/inference mode.


# --------------- Path B: H-streaming fallback (weights exceed VMEM) ---------

def _mlp_kernel_streaming(x_ref, w1_ref, w2_ref, o_ref, acc_ref):
    # grid = (row tiles, H tiles); acc_ref (tm, C) f32 persists across the
    # H (reduction) axis.
    j = pl.program_id(1)

    @pl.when(j == 0)
    def _():
        acc_ref[...] = jnp.zeros_like(acc_ref)

    xb = x_ref[...].astype(jnp.bfloat16)
    h = jnp.dot(xb, w1_ref[...], preferred_element_type=jnp.float32)
    h = _gelu(h)
    acc_ref[...] += jnp.dot(h.astype(jnp.bfloat16), w2_ref[...],
                            preferred_element_type=jnp.float32)

    @pl.when(j == pl.num_programs(1) - 1)
    def _():
        o_ref[...] = acc_ref[...].astype(o_ref.dtype)


# --------------- Wrapper ----------------------------------------------------

def _round_up(a, b):
    return (a + b - 1) // b * b


def _vmem_budget_bytes():
    try:
        cap = pltpu.get_tpu_info().vmem_capacity_bytes
    except Exception:
        cap = 64 * 1024 * 1024  # conservative: v7x per-TC VMEM
    # Leave ~15% headroom for Mosaic internal scratch / compiler buffers —
    # never request the full physical VMEM.
    return int(cap * 0.85)


def standard_mlp(x, w1, w2, *, tm=256, th=1024, force_streaming=False):
    """Fused StandardMLP forward (eval mode).

    x : [B, T, C] activations (any float dtype).
    w1: (C, H) bf16 — c_fc.weight.T,   pre-transposed/cast once at init.
    w2: (H, C) bf16 — c_proj.weight.T, pre-transposed/cast once at init.
    """
    B, T, C = x.shape
    Cw, H = w1.shape
    assert Cw == C and w2.shape == (H, C)
    assert C % 128 == 0, "embed dim must be lane-aligned (multiple of 128)"

    M = B * T
    out_dtype = x.dtype
    x2d = x.reshape(M, C)                      # no pad, no wrapper-side cast

    # Row tile: multiple of 8 (sublane), clamped for small M.
    tm = max(8, min(tm, _round_up(M, 8)))

    budget = _vmem_budget_bytes()
    w_bytes = int((w1.size + w2.size) * w1.dtype.itemsize)
    flops = 4 * M * C * H                      # two matmuls

    # Resident-path VMEM estimate: single-buffered weights + double-buffered
    # x/out row tiles + the (tm, H) intermediate temps (h f32, gelu f32, bf16).
    resident_bytes = (w_bytes
                      + 2 * tm * C * (x.dtype.itemsize + out_dtype.itemsize)
                      + tm * H * (4 + 4 + 2))
    use_resident = (not force_streaming) and resident_bytes <= budget

    if use_resident:
        grid_m = pl.cdiv(M, tm)
        out = pl.pallas_call(
            _mlp_kernel_resident,
            out_shape=jax.ShapeDtypeStruct((M, C), out_dtype),
            grid_spec=pltpu.PrefetchScalarGridSpec(
                num_scalar_prefetch=0,
                grid=(grid_m,),
                in_specs=[
                    pl.BlockSpec((tm, C), lambda i: (i, 0)),              # x
                    pl.BlockSpec(memory_space=pltpu.MemorySpace.VMEM),    # W1
                    pl.BlockSpec(memory_space=pltpu.MemorySpace.VMEM),    # W2
                ],
                out_specs=pl.BlockSpec((tm, C), lambda i: (i, 0)),
            ),
            compiler_params=pltpu.CompilerParams(
                dimension_semantics=("parallel",),
                vmem_limit_bytes=budget,
            ),
            cost_estimate=pl.CostEstimate(
                flops=flops,
                transcendentals=M * H,
                bytes_accessed=int(x2d.size * x.dtype.itemsize      # x in
                                   + w_bytes                        # weights once
                                   + M * C * out_dtype.itemsize),   # out
            ),
        )(x2d, w1, w2)
    else:
        # Streaming fallback: amortize weight re-streaming with bigger tiles.
        tm = max(tm, min(512, _round_up(M, 8)))
        grid_m = pl.cdiv(M, tm)
        th = min(th, H)
        assert H % th == 0 and th % 128 == 0
        grid = (grid_m, H // th)
        out = pl.pallas_call(
            _mlp_kernel_streaming,
            out_shape=jax.ShapeDtypeStruct((M, C), out_dtype),
            grid_spec=pltpu.PrefetchScalarGridSpec(
                num_scalar_prefetch=0,
                grid=grid,
                in_specs=[
                    pl.BlockSpec((tm, C), lambda i, j: (i, 0)),   # x row tile
                    pl.BlockSpec((C, th), lambda i, j: (0, j)),   # W1 H-tile
                    pl.BlockSpec((th, C), lambda i, j: (j, 0)),   # W2 H-tile
                ],
                out_specs=pl.BlockSpec((tm, C), lambda i, j: (i, 0)),
                scratch_shapes=[pltpu.VMEM((tm, C), jnp.float32)],
            ),
            compiler_params=pltpu.CompilerParams(
                dimension_semantics=("parallel", "arbitrary"),
                vmem_limit_bytes=budget,
            ),
            cost_estimate=pl.CostEstimate(
                flops=flops,
                transcendentals=M * H,
                bytes_accessed=int(x2d.size * x.dtype.itemsize
                                   + grid_m * w_bytes               # re-streamed
                                   + M * C * out_dtype.itemsize),
            ),
        )(x2d, w1, w2)

    return out.reshape(B, T, C)


def init_params(key, n_embd):
    """nn.Linear-style init; weights returned ALREADY transposed to (in, out)
    and cast to bf16 once (hoisted out of the per-call path)."""
    hidden = 4 * n_embd
    k_fc, k_proj = jax.random.split(key)
    bound_fc = 1.0 / math.sqrt(n_embd)
    bound_proj = 1.0 / math.sqrt(hidden)
    # PyTorch stores (out, in): c_fc.weight is (H, C), c_proj.weight is (C, H).
    w_fc = jax.random.uniform(k_fc, (hidden, n_embd), jnp.float32,
                              -bound_fc, bound_fc)
    w_proj = jax.random.uniform(k_proj, (n_embd, hidden), jnp.float32,
                                -bound_proj, bound_proj)
    w1 = jnp.asarray(w_fc.T, jnp.bfloat16)     # (C, H)
    w2 = jnp.asarray(w_proj.T, jnp.bfloat16)   # (H, C)
    return w1, w2


if __name__ == "__main__":
    # Small, tile-friendly shapes consistent with the module:
    # batch=2, seq=8, n_embd=128 -> hidden=512.
    B, T, C = 2, 8, 128
    H = 4 * C

    key = jax.random.PRNGKey(0)
    k_x, k_w = jax.random.split(key)
    x = jax.random.normal(k_x, (B, T, C), jnp.float32)
    w1, w2 = init_params(k_w, C)

    # Pure-JAX reference using the same bf16-rounded operands / f32 accumulation
    # (eval-mode dropout == identity; bias=False per ModelConfig default).
    xb = x.reshape(-1, C).astype(jnp.bfloat16).astype(jnp.float32)
    w1f = w1.astype(jnp.float32)
    w2f = w2.astype(jnp.float32)
    h_ref = _gelu(xb @ w1f)
    y_ref = (h_ref.astype(jnp.bfloat16).astype(jnp.float32) @ w2f).reshape(B, T, C)

    # Path A: weight-resident (the one chosen automatically at this size).
    y = jax.block_until_ready(standard_mlp(x, w1, w2))
    assert jnp.allclose(y, y_ref, atol=2e-2, rtol=2e-2), "resident path mismatch"

    # Path B: H-streaming fallback, exercised explicitly (grid = (1, 2)).
    y2 = jax.block_until_ready(standard_mlp(x, w1, w2, th=256,
                                            force_streaming=True))
    assert jnp.allclose(y2, y_ref, atol=2e-2, rtol=2e-2), "streaming path mismatch"

    print("KERNEL_OK")
</pallas_src>

<mosaic_0001>
module attributes {stable_mosaic.version = 11 : i64} {
  func.func @_mlp_kernel_resident(%arg0: i32, %arg1: memref<16x128xf32, #tpu.memory_space<vmem>>, %arg2: memref<128x512xbf16, #tpu.memory_space<vmem>>, %arg3: memref<512x128xbf16, #tpu.memory_space<vmem>>, %arg4: memref<16x128xf32, #tpu.memory_space<vmem>>) attributes {dimension_semantics = [#tpu.dimension_semantics<parallel>], iteration_bounds = array<i64: 1>, scalar_prefetch = 0 : i64, scratch_operands = 0 : i64, tpu.core_type = #tpu.core_type<tc>, window_params = [{transform_indices = @transform_0, window_bounds = array<i64: 16, 128>}, {pipeline_mode = #tpu.pipeline_mode<synchronous>, transform_indices = @transform_1, window_bounds = array<i64: 128, 512>}, {pipeline_mode = #tpu.pipeline_mode<synchronous>, transform_indices = @transform_2, window_bounds = array<i64: 512, 128>}, {transform_indices = @transform_3, window_bounds = array<i64: 16, 128>}]} {
    %c0 = arith.constant 0 : index
    %c0_0 = arith.constant 0 : index
    %0 = vector.load %arg1[%c0, %c0_0] : memref<16x128xf32, #tpu.memory_space<vmem>>, vector<16x128xf32>
    %1 = arith.truncf %0 : vector<16x128xf32> to vector<16x128xbf16>
    %c0_1 = arith.constant 0 : index
    %c0_2 = arith.constant 0 : index
    %2 = vector.load %arg2[%c0_1, %c0_2] : memref<128x512xbf16, #tpu.memory_space<vmem>>, vector<128x512xbf16>
    %cst = arith.constant dense<0.000000e+00> : vector<16x512xf32>
    %3 = tpu.matmul %1, %2, %cst {dimension_numbers = #tpu.dot_dimension_numbers<[1], [0], [0], [1], [0, 0, 1, 1], [], []>} : vector<16x128xbf16>, vector<128x512xbf16>, vector<16x512xf32> -> vector<16x512xf32>
    %cst_3 = arith.constant 5.000000e-01 : f32
    %4 = vector.broadcast %cst_3 : f32 to vector<16x512xf32>
    %5 = arith.mulf %4, %3 : vector<16x512xf32>
    %cst_4 = arith.constant 0.707106769 : f32
    %6 = vector.broadcast %cst_4 : f32 to vector<16x512xf32>
    %7 = arith.mulf %3, %6 : vector<16x512xf32>
    %8 = math.erf %7 : vector<16x512xf32>
    %cst_5 = arith.constant 1.000000e+00 : f32
    %9 = vector.broadcast %cst_5 : f32 to vector<16x512xf32>
    %10 = arith.addf %9, %8 : vector<16x512xf32>
    %11 = arith.mulf %5, %10 : vector<16x512xf32>
    %12 = arith.truncf %11 : vector<16x512xf32> to vector<16x512xbf16>
    %c0_6 = arith.constant 0 : index
    %c0_7 = arith.constant 0 : index
    %13 = vector.load %arg3[%c0_6, %c0_7] : memref<512x128xbf16, #tpu.memory_space<vmem>>, vector<512x128xbf16>
    %cst_8 = arith.constant dense<0.000000e+00> : vector<16x128xf32>
    %14 = tpu.matmul %12, %13, %cst_8 {dimension_numbers = #tpu.dot_dimension_numbers<[1], [0], [0], [1], [0, 0, 1, 1], [], []>} : vector<16x512xbf16>, vector<512x128xbf16>, vector<16x128xf32> -> vector<16x128xf32>
    %c0_9 = arith.constant 0 : index
    %c0_10 = arith.constant 0 : index
    %15 = vector.load %arg4[%c0_9, %c0_10] : memref<16x128xf32, #tpu.memory_space<vmem>>, vector<16x128xf32>
    tpu.vector_store %arg4[%c0_9, %c0_10], %14 {strides = array<i32>} : memref<16x128xf32, #tpu.memory_space<vmem>>, vector<16x128xf32>,
    return
  }
  func.func @transform_0(%arg0: i32) -> (i32, i32) {
    %c0_i32 = arith.constant 0 : i32
    %c0_i32_0 = arith.constant 0 : i32
    return %arg0, %c0_i32 : i32, i32
  }
  func.func @transform_1(%arg0: i32) -> (i32, i32) {
    %c0_i32 = arith.constant 0 : i32
    %c0_i32_0 = arith.constant 0 : i32
    %c0_i32_1 = arith.constant 0 : i32
    return %c0_i32, %c0_i32_0 : i32, i32
  }
  func.func @transform_2(%arg0: i32) -> (i32, i32) {
    %c0_i32 = arith.constant 0 : i32
    %c0_i32_0 = arith.constant 0 : i32
    %c0_i32_1 = arith.constant 0 : i32
    return %c0_i32, %c0_i32_0 : i32, i32
  }
  func.func @transform_3(%arg0: i32) -> (i32, i32) {
    %c0_i32 = arith.constant 0 : i32
    %c0_i32_0 = arith.constant 0 : i32
    return %arg0, %c0_i32 : i32, i32
  }
}

</mosaic_0001>

<llo_original>
// kernel: tpu_custom_call.1
$region0: #{tpu_custom_call.1}
  #allocation0 [shape = 'u32[]', space=smem, size = 0x4, offset = 0x4, fixed_abs, tag = 'smem constant byte address 0x4 - core index']
  #allocation1 [shape = 'u32[144,128]{1,0:T(1,128)}', space=vmem, size = 0x12000, scoped, tag = 'internal scratch']
  %s0 = inlined_call_operand.hbm [shape: f32[16,128], index: 0, kind: input, shape index: {}]
  %s1 = inlined_call_operand.hbm [shape: bf16[128,512], index: 1, kind: input, shape index: {}]
  %s2 = inlined_call_operand.hbm [shape: bf16[512,128], index: 2, kind: input, shape index: {}]
  %s3 = inlined_call_operand.hbm [shape: f32[16,128], index: 3, kind: output, shape index: {}]
  %s4 = sld [smem:[#allocation0]]
  $region34: #{tpu_custom_call.1} parent=0
    _
  %s6 = ssub.s32 1, %s4
  %s7 = scalar_select 0, %s6, %s4
  $region1: #{tpu_custom_call.1} parent=0
    #allocation2 [shape = 'u8[8192]{0}', space=vmem, size = 0x2000, scoped, tag = 'input window, operand 0, single buffered']
    #allocation3 [shape = 's32[1]{0}', space=sflag, size = 0x4, scoped, tag = 'scoped memory for tpu_custom_call.1']
    #allocation4 [shape = 's32[1]{0}', space=sflag, size = 0x4, scoped, tag = 'scoped memory for tpu_custom_call.1']
    #allocation5 [shape = 'u8[131072]{0}', space=vmem, size = 0x20000, scoped, tag = 'input window, operand 1, single buffered']
    #allocation6 [shape = 's32[1]{0}', space=sflag, size = 0x4, scoped, tag = 'scoped memory for tpu_custom_call.1']
    #allocation7 [shape = 'u8[131072]{0}', space=vmem, size = 0x20000, scoped, tag = 'input window, operand 2, single buffered']
    #allocation8 [shape = 'u8[8192]{0}', space=vmem, size = 0x2000, scoped, tag = 'output window, operand 0, single buffered']
    %8 = vsyncpa [#allocation3], 0
    %9 = vsyncpa [#allocation6], 0
    %10 = vsyncpa [#allocation4], 0
    // Predicated region
    $region2: #{tpu_custom_call.1} parent=1 // pred_check
      _
    $region3: #{tpu_custom_call.1} parent=1 // pred_check_branch
      %12 = sbr.rel (0) target = $region5
    $region4: #{tpu_custom_call.1} parent=1 // pred_region
      %s14 = ssub.s32 256, 256
      %15 = vsyncadd [#allocation3], %s14
      %s16 = sshll.u32 [#allocation2], 4
      %s17 = int_to_ptr.vmem [resolvable:$true] %s16
      %22 = dma.hbm_to_vmem [thread:$0]  %s0, 256, %s17, [#allocation3], 128, 128, 8
    $region5: #{tpu_custom_call.1} parent=1 // pred_fallthru
      _
    // Predicated region
    $region6: #{tpu_custom_call.1} parent=1 // pred_check
      _
    $region7: #{tpu_custom_call.1} parent=1 // pred_check_branch
      %24 = sbr.rel (0) target = $region9
    $region8: #{tpu_custom_call.1} parent=1 // pred_region
      %s26 = ssub.s32 4096, 4096
      %27 = vsyncadd [#allocation6], %s26
      %s28 = sshll.u32 [#allocation5], 4
      %s29 = int_to_ptr.vmem [resolvable:$true] %s28
      %34 = dma.hbm_to_vmem [thread:$0]  %s1, 4096, %s29, [#allocation6], 256, 256, 16
    $region9: #{tpu_custom_call.1} parent=1 // pred_fallthru
      _
    // Predicated region
    $region10: #{tpu_custom_call.1} parent=1 // pred_check
      _
    $region11: #{tpu_custom_call.1} parent=1 // pred_check_branch
      %36 = sbr.rel (0) target = $region13
    $region12: #{tpu_custom_call.1} parent=1 // pred_region
      %s38 = ssub.s32 4096, 4096
      %39 = vsyncadd [#allocation6], %s38
      %s40 = sshll.u32 [#allocation7], 4
      %s41 = int_to_ptr.vmem [resolvable:$true] %s40
      %46 = dma.hbm_to_vmem [thread:$0]  %s2, 4096, %s41, [#allocation6], 64, 64, 4
    $region13: #{tpu_custom_call.1} parent=1 // pred_fallthru
      _
    // Predicated region
    $region14: #{tpu_custom_call.1} parent=1 // pred_check
      _
    $region15: #{tpu_custom_call.1} parent=1 // pred_check_branch
      %48 = sbr.rel (0) target = $region17
    $region16: #{tpu_custom_call.1} parent=1 // pred_region
      %49 = dma.done [#allocation3], 256
    $region17: #{tpu_custom_call.1} parent=1 // pred_fallthru
      _
    // Predicated region
    $region18: #{tpu_custom_call.1} parent=1 // pred_check
      _
    $region19: #{tpu_custom_call.1} parent=1 // pred_check_branch
      %51 = sbr.rel (0) target = $region21
    $region20: #{tpu_custom_call.1} parent=1 // pred_region
      %52 = dma.done [#allocation6], 4096
    $region21: #{tpu_custom_call.1} parent=1 // pred_fallthru
      _
    // Predicated region
    $region22: #{tpu_custom_call.1} parent=1 // pred_check
      _
    $region23: #{tpu_custom_call.1} parent=1 // pred_check_branch
      %54 = sbr.rel (0) target = $region25
    $region24: #{tpu_custom_call.1} parent=1 // pred_region
      %55 = dma.done [#allocation6], 4096
    $region25: #{tpu_custom_call.1} parent=1 // pred_fallthru
      _
    %v57 = vld [vmem:[#allocation2] sm:$0xff]
    %v58 = vld [vmem:[#allocation2 + $0x8] sm:$0xff]
    %v59 = vpack.c.bf16 %v58, %v57
    %v60 = vld [vmem:[#allocation5] sm:$0xff]
    %v61 = vld [vmem:[#allocation5 + $0x8] sm:$0xff]
    %v62 = vld [vmem:[#allocation5 + $0x10] sm:$0xff]
    %v63 = vld [vmem:[#allocation5 + $0x18] sm:$0xff]
    %v64 = vld [vmem:[#allocation5 + $0x20] sm:$0xff]
    %v65 = vld [vmem:[#allocation5 + $0x28] sm:$0xff]
    %v66 = vld [vmem:[#allocation5 + $0x30] sm:$0xff]
    %v67 = vld [vmem:[#allocation5 + $0x38] sm:$0xff]
    %v68 = vld [vmem:[#allocation5 + $0x40] sm:$0xff]
    %v69 = vld [vmem:[#allocation5 + $0x48] sm:$0xff]
    %v70 = vld [vmem:[#allocation5 + $0x50] sm:$0xff]
    %v71 = vld [vmem:[#allocation5 + $0x58] sm:$0xff]
    %v72 = vld [vmem:[#allocation5 + $0x60] sm:$0xff]
    %v73 = vld [vmem:[#allocation5 + $0x68] sm:$0xff]
    %v74 = vld [vmem:[#allocation5 + $0x70] sm:$0xff]
    %v75 = vld [vmem:[#allocation5 + $0x78] sm:$0xff]
    %v76 = vld [vmem:[#allocation5 + $0x80] sm:$0xff]
    %v77 = vld [vmem:[#allocation5 + $0x88] sm:$0xff]
    %v78 = vld [vmem:[#allocation5 + $0x90] sm:$0xff]
    %v79 = vld [vmem:[#allocation5 + $0x98] sm:$0xff]
    %v80 = vld [vmem:[#allocation5 + $0xa0] sm:$0xff]
    %v81 = vld [vmem:[#allocation5 + $0xa8] sm:$0xff]
    %v82 = vld [vmem:[#allocation5 + $0xb0] sm:$0xff]
    %v83 = vld [vmem:[#allocation5 + $0xb8] sm:$0xff]
    %v84 = vld [vmem:[#allocation5 + $0xc0] sm:$0xff]
    %v85 = vld [vmem:[#allocation5 + $0xc8] sm:$0xff]
    %v86 = vld [vmem:[#allocation5 + $0xd0] sm:$0xff]
    %v87 = vld [vmem:[#allocation5 + $0xd8] sm:$0xff]
    %v88 = vld [vmem:[#allocation5 + $0xe0] sm:$0xff]
    %v89 = vld [vmem:[#allocation5 + $0xe8] sm:$0xff]
    %v90 = vld [vmem:[#allocation5 + $0xf0] sm:$0xff]
    %v91 = vld [vmem:[#allocation5 + $0xf8] sm:$0xff]
    %v124 = vunpack.c.l.b16 %v60
    %v125 = vunpack.c.h.b16 %v60
    %v126 = vunpack.c.l.b16 %v61
    %v127 = vunpack.c.h.b16 %v61
    %v128 = vunpack.c.l.b16 %v62
    %v129 = vunpack.c.h.b16 %v62
    %v130 = vunpack.c.l.b16 %v63
    %v131 = vunpack.c.h.b16 %v63
    %v132 = vunpack.c.l.b16 %v64
    %v133 = vunpack.c.h.b16 %v64
    %v134 = vunpack.c.l.b16 %v65
    %v135 = vunpack.c.h.b16 %v65
    %v136 = vunpack.c.l.b16 %v66
    %v137 = vunpack.c.h.b16 %v66
    %v138 = vunpack.c.l.b16 %v67
    %v139 = vunpack.c.h.b16 %v67
    %v140 = vunpack.c.l.b16 %v68
    %v141 = vunpack.c.h.b16 %v68
    %v142 = vunpack.c.l.b16 %v69
    %v143 = vunpack.c.h.b16 %v69
    %v144 = vunpack.c.l.b16 %v70
    %v145 = vunpack.c.h.b16 %v70
    %v146 = vunpack.c.l.b16 %v71
    %v147 = vunpack.c.h.b16 %v71
    %v148 = vunpack.c.l.b16 %v72
    %v149 = vunpack.c.h.b16 %v72
    %v150 = vunpack.c.l.b16 %v73
    %v151 = vunpack.c.h.b16 %v73
    %v152 = vunpack.c.l.b16 %v74
    %v153 = vunpack.c.h.b16 %v74
    %v154 = vunpack.c.l.b16 %v75
    %v155 = vunpack.c.h.b16 %v75
    %v156 = vunpack.c.l.b16 %v76
    %v157 = vunpack.c.h.b16 %v76
    %v158 = vunpack.c.l.b16 %v77
    %v159 = vunpack.c.h.b16 %v77
    %v160 = vunpack.c.l.b16 %v78
    %v161 = vunpack.c.h.b16 %v78
    %v162 = vunpack.c.l.b16 %v79
    %v163 = vunpack.c.h.b16 %v79
    %v164 = vunpack.c.l.b16 %v80
    %v165 = vunpack.c.h.b16 %v80
    %v166 = vunpack.c.l.b16 %v81
    %v167 = vunpack.c.h.b16 %v81
    %v168 = vunpack.c.l.b16 %v82
    %v169 = vunpack.c.h.b16 %v82
    %v170 = vunpack.c.l.b16 %v83
    %v171 = vunpack.c.h.b16 %v83
    %v172 = vunpack.c.l.b16 %v84
    %v173 = vunpack.c.h.b16 %v84
    %v174 = vunpack.c.l.b16 %v85
    %v175 = vunpack.c.h.b16 %v85
    %v176 = vunpack.c.l.b16 %v86
    %v177 = vunpack.c.h.b16 %v86
    %v178 = vunpack.c.l.b16 %v87
    %v179 = vunpack.c.h.b16 %v87
    %v180 = vunpack.c.l.b16 %v88
    %v181 = vunpack.c.h.b16 %v88
    %v182 = vunpack.c.l.b16 %v89
    %v183 = vunpack.c.h.b16 %v89
    %v184 = vunpack.c.l.b16 %v90
    %v185 = vunpack.c.h.b16 %v90
    %v186 = vunpack.c.l.b16 %v91
    %v187 = vunpack.c.h.b16 %v91
    %v188 = vpack.c.b16 %v128, %v124
    %v189 = vpack.c.b16 %v129, %v125
    %v190 = vpack.c.b16 %v130, %v126
    %v191 = vpack.c.b16 %v131, %v127
    %v192 = vpack.c.b16 %v136, %v132
    %v193 = vpack.c.b16 %v137, %v133
    %v194 = vpack.c.b16 %v138, %v134
    %v195 = vpack.c.b16 %v139, %v135
    %v196 = vpack.c.b16 %v144, %v140
    %v197 = vpack.c.b16 %v145, %v141
    %v198 = vpack.c.b16 %v146, %v142
    %v199 = vpack.c.b16 %v147, %v143
    %v200 = vpack.c.b16 %v152, %v148
    %v201 = vpack.c.b16 %v153, %v149
    %v202 = vpack.c.b16 %v154, %v150
    %v203 = vpack.c.b16 %v155, %v151
    %v204 = vpack.c.b16 %v160, %v156
    %v205 = vpack.c.b16 %v161, %v157
    %v206 = vpack.c.b16 %v162, %v158
    %v207 = vpack.c.b16 %v163, %v159
    %v208 = vpack.c.b16 %v168, %v164
    %v209 = vpack.c.b16 %v169, %v165
    %v210 = vpack.c.b16 %v170, %v166
    %v211 = vpack.c.b16 %v171, %v167
    %v212 = vpack.c.b16 %v176, %v172
    %v213 = vpack.c.b16 %v177, %v173
    %v214 = vpack.c.b16 %v178, %v174
    %v215 = vpack.c.b16 %v179, %v175
    %v216 = vpack.c.b16 %v184, %v180
    %v217 = vpack.c.b16 %v185, %v181
    %v218 = vpack.c.b16 %v186, %v182
    %v219 = vpack.c.b16 %v187, %v183
    %252 = vmatprep.subr.bf16.mxu0 %v217
    %253 = vmatpush1.bf16.msra.mxu0 %v216
    %254 = vmatprep.subr.bf16.mxu0 %v213
    %255 = vmatpush1.bf16.msra.mxu0 %v212
    %256 = vmatprep.subr.bf16.mxu0 %v209
    %257 = vmatpush1.bf16.msra.mxu0 %v208
    %258 = vmatprep.subr.bf16.mxu0 %v205
    %259 = vmatpush1.bf16.msra.mxu0 %v204
    %260 = vmatprep.subr.bf16.mxu0 %v201
    %261 = vmatpush1.bf16.msra.mxu0 %v200
    %262 = vmatprep.subr.bf16.mxu0 %v197
    %263 = vmatpush1.bf16.msra.mxu0 %v196
    %264 = vmatprep.subr.bf16.mxu0 %v193
    %265 = vmatpush1.bf16.msra.mxu0 %v192
    %266 = vmatprep.subr.bf16.mxu0 %v189
    %267 = vmatpush1.bf16.msra.mxu0 %v188
    %268 = vmatprep.subr.bf16.mxu0 0
    %269 = vmatpush2.bf16.msra.mxu0 0
    %270 = vmatprep.subr.bf16.mxu0 0
    %271 = vmatpush2.bf16.msra.mxu0 0
    %272 = vmatprep.subr.bf16.mxu0 0
    %273 = vmatpush2.bf16.msra.mxu0 0
    %274 = vmatprep.subr.bf16.mxu0 0
    %275 = vmatpush2.bf16.msra.mxu0 0
    %276 = vmatprep.subr.bf16.mxu0 0
    %277 = vmatpush2.bf16.msra.mxu0 0
    %278 = vmatprep.subr.bf16.mxu0 0
    %279 = vmatpush2.bf16.msra.mxu0 0
    %280 = vmatprep.subr.bf16.mxu0 0
    %281 = vmatpush2.bf16.msra.mxu0 0
    %282 = vmatprep.subr.bf16.mxu0 0
    %283 = vmatpush2.bf16.msra.mxu0 0
    %284 = vmatprep.mubr.bf16.mxu0 0
    %285 = vmatmul.mubr.bf16.gmra.mxu0 %v59
    %v286 = vpop.f32.mrf.mxu0
    %v287 = vadd.f32 0.0, %v286
    %v288 = vpop.f32.mrf.mxu0
    %v289 = vadd.f32 0.0, %v288
    %v290 = vpop.f32.mrf.mxu0
    %v291 = vadd.f32 0.0, %v290
    %v292 = vpop.f32.mrf.mxu0
    %v293 = vadd.f32 0.0, %v292
    %294 = vdwg.mxu0
    %295 = vmatprep.subr.bf16.mxu0 %v219
    %296 = vmatpush1.bf16.msra.mxu0 %v218
    %297 = vmatprep.subr.bf16.mxu0 %v215
    %298 = vmatpush1.bf16.msra.mxu0 %v214
    %299 = vmatprep.subr.bf16.mxu0 %v211
    %300 = vmatpush1.bf16.msra.mxu0 %v210
    %301 = vmatprep.subr.bf16.mxu0 %v207
    %302 = vmatpush1.bf16.msra.mxu0 %v206
    %303 = vmatprep.subr.bf16.mxu0 %v203
    %304 = vmatpush1.bf16.msra.mxu0 %v202
    %305 = vmatprep.subr.bf16.mxu0 %v199
    %306 = vmatpush1.bf16.msra.mxu0 %v198
    %307 = vmatprep.subr.bf16.mxu0 %v195
    %308 = vmatpush1.bf16.msra.mxu0 %v194
    %309 = vmatprep.subr.bf16.mxu0 %v191
    %310 = vmatpush1.bf16.msra.mxu0 %v190
    %311 = vmatprep.subr.bf16.mxu0 0
    %312 = vmatpush2.bf16.msra.mxu0 0
    %313 = vmatprep.subr.bf16.mxu0 0
    %314 = vmatpush2.bf16.msra.mxu0 0
    %315 = vmatprep.subr.bf16.mxu0 0
    %316 = vmatpush2.bf16.msra.mxu0 0
    %317 = vmatprep.subr.bf16.mxu0 0
    %318 = vmatpush2.bf16.msra.mxu0 0
    %319 = vmatprep.subr.bf16.mxu0 0
    %320 = vmatpush2.bf16.msra.mxu0 0
    %321 = vmatprep.subr.bf16.mxu0 0
    %322 = vmatpush2.bf16.msra.mxu0 0
    %323 = vmatprep.subr.bf16.mxu0 0
    %324 = vmatpush2.bf16.msra.mxu0 0
    %325 = vmatprep.subr.bf16.mxu0 0
    %326 = vmatpush2.bf16.msra.mxu0 0
    %327 = vmatprep.mubr.bf16.mxu0 0
    %328 = vmatmul.mubr.bf16.gmra.mxu0 %v59
    %v329 = vpop.f32.mrf.mxu0
    %v330 = vadd.f32 0.0, %v329
    %v331 = vpop.f32.mrf.mxu0
    %v332 = vadd.f32 0.0, %v331
    %v333 = vpop.f32.mrf.mxu0
    %v334 = vadd.f32 0.0, %v333
    %v335 = vpop.f32.mrf.mxu0
    %v336 = vadd.f32 0.0, %v335
    %337 = vdwg.mxu0
    %v338 = vmul.f32 %v287, 0.5
    %v339 = vmul.f32 %v289, 0.5
    %v340 = vmul.f32 %v330, 0.5
    %v341 = vmul.f32 %v332, 0.5
    %v342 = vmul.f32 %v291, 0.5
    %v343 = vmul.f32 %v293, 0.5
    %v344 = vmul.f32 %v334, 0.5
    %v345 = vmul.f32 %v336, 0.5
    %v346 = vmul.f32 %v287, 0.70710677
    %v347 = vmul.f32 %v289, 0.70710677
    %v348 = vmul.f32 %v330, 0.70710677
    %v349 = vmul.f32 %v332, 0.70710677
    %v350 = vmul.f32 %v291, 0.70710677
    %v351 = vmul.f32 %v293, 0.70710677
    %v352 = vmul.f32 %v334, 0.70710677
    %v353 = vmul.f32 %v336, 0.70710677
    %v354 = verf.f32.pop %v346
    %v355 = verf.f32.pop %v347
    %v356 = verf.f32.pop %v348
    %v357 = verf.f32.pop %v349
    %v358 = verf.f32.pop %v350
    %v359 = verf.f32.pop %v351
    %v360 = verf.f32.pop %v352
    %v361 = verf.f32.pop %v353
    %v362 = vadd.f32 %v354, 1.0
    %v363 = vadd.f32 %v355, 1.0
    %v364 = vadd.f32 %v356, 1.0
    %v365 = vadd.f32 %v357, 1.0
    %v366 = vadd.f32 %v358, 1.0
    %v367 = vadd.f32 %v359, 1.0
    %v368 = vadd.f32 %v360, 1.0
    %v369 = vadd.f32 %v361, 1.0
    %v370 = vmul.f32 %v338, %v362
    %v371 = vmul.f32 %v339, %v363
    %v372 = vmul.f32 %v340, %v364
    %v373 = vmul.f32 %v341, %v365
    %v374 = vmul.f32 %v342, %v366
    %v375 = vmul.f32 %v343, %v367
    %v376 = vmul.f32 %v344, %v368
    %v377 = vmul.f32 %v345, %v369
    %v378 = vpack.c.bf16 %v374, %v370
    %v379 = vpack.c.bf16 %v375, %v371
    %v380 = vpack.c.bf16 %v376, %v372
    %v381 = vpack.c.bf16 %v377, %v373
    %v382 = vld [vmem:[#allocation7] sm:$0xf]
    %v383 = vld [vmem:[#allocation7 + $0x4] sm:$0xf]
    %v384 = vld [vmem:[#allocation7 + $0x8] sm:$0xf]
    %v385 = vld [vmem:[#allocation7 + $0xc] sm:$0xf]
    %v386 = vld [vmem:[#allocation7 + $0x10] sm:$0xf]
    %v387 = vld [vmem:[#allocation7 + $0x14] sm:$0xf]
    %v388 = vld [vmem:[#allocation7 + $0x18] sm:$0xf]
    %v389 = vld [vmem:[#allocation7 + $0x1c] sm:$0xf]
    %v390 = vld [vmem:[#allocation7 + $0x20] sm:$0xf]
    %v391 = vld [vmem:[#allocation7 + $0x24] sm:$0xf]
    %v392 = vld [vmem:[#allocation7 + $0x28] sm:$0xf]
    %v393 = vld [vmem:[#allocation7 + $0x2c] sm:$0xf]
    %v394 = vld [vmem:[#allocation7 + $0x30] sm:$0xf]
    %v395 = vld [vmem:[#allocation7 + $0x34] sm:$0xf]
    %v396 = vld [vmem:[#allocation7 + $0x38] sm:$0xf]
    %v397 = vld [vmem:[#allocation7 + $0x3c] sm:$0xf]
    %v398 = vld [vmem:[#allocation7 + $0x40] sm:$0xf]
    %v399 = vld [vmem:[#allocation7 + $0x44] sm:$0xf]
    %v400 = vld [vmem:[#allocation7 + $0x48] sm:$0xf]
    %v401 = vld [vmem:[#allocation7 + $0x4c] sm:$0xf]
    %v402 = vld [vmem:[#allocation7 + $0x50] sm:$0xf]
    %v403 = vld [vmem:[#allocation7 + $0x54] sm:$0xf]
    %v404 = vld [vmem:[#allocation7 + $0x58] sm:$0xf]
    %v405 = vld [vmem:[#allocation7 + $0x5c] sm:$0xf]
    %v406 = vld [vmem:[#allocation7 + $0x60] sm:$0xf]
    %v407 = vld [vmem:[#allocation7 + $0x64] sm:$0xf]
    %v408 = vld [vmem:[#allocation7 + $0x68] sm:$0xf]
    %v409 = vld [vmem:[#allocation7 + $0x6c] sm:$0xf]
    %v410 = vld [vmem:[#allocation7 + $0x70] sm:$0xf]
    %v411 = vld [vmem:[#allocation7 + $0x74] sm:$0xf]
    %v412 = vld [vmem:[#allocation7 + $0x78] sm:$0xf]
    %v413 = vld [vmem:[#allocation7 + $0x7c] sm:$0xf]
    %v414 = vld [vmem:[#allocation7 + $0x80] sm:$0xf]
    %v415 = vld [vmem:[#allocation7 + $0x84] sm:$0xf]
    %v416 = vld [vmem:[#allocation7 + $0x88] sm:$0xf]
    %v417 = vld [vmem:[#allocation7 + $0x8c] sm:$0xf]
    %v418 = vld [vmem:[#allocation7 + $0x90] sm:$0xf]
    %v419 = vld [vmem:[#allocation7 + $0x94] sm:$0xf]
    %v420 = vld [vmem:[#allocation7 + $0x98] sm:$0xf]
    %v421 = vld [vmem:[#allocation7 + $0x9c] sm:$0xf]
    %v422 = vld [vmem:[#allocation7 + $0xa0] sm:$0xf]
    %v423 = vld [vmem:[#allocation7 + $0xa4] sm:$0xf]
    %v424 = vld [vmem:[#allocation7 + $0xa8] sm:$0xf]
    %v425 = vld [vmem:[#allocation7 + $0xac] sm:$0xf]
    %v426 = vld [vmem:[#allocation7 + $0xb0] sm:$0xf]
    %v427 = vld [vmem:[#allocation7 + $0xb4] sm:$0xf]
    %v428 = vld [vmem:[#allocation7 + $0xb8] sm:$0xf]
    %v429 = vld [vmem:[#allocation7 + $0xbc] sm:$0xf]
    %v430 = vld [vmem:[#allocation7 + $0xc0] sm:$0xf]
    %v431 = vld [vmem:[#allocation7 + $0xc4] sm:$0xf]
    %v432 = vld [vmem:[#allocation7 + $0xc8] sm:$0xf]
    %v433 = vld [vmem:[#allocation7 + $0xcc] sm:$0xf]
    %v434 = vld [vmem:[#allocation7 + $0xd0] sm:$0xf]
    %v435 = vld [vmem:[#allocation7 + $0xd4] sm:$0xf]
    %v436 = vld [vmem:[#allocation7 + $0xd8] sm:$0xf]
    %v437 = vld [vmem:[#allocation7 + $0xdc] sm:$0xf]
    %v438 = vld [vmem:[#allocation7 + $0xe0] sm:$0xf]
    %v439 = vld [vmem:[#allocation7 + $0xe4] sm:$0xf]
    %v440 = vld [vmem:[#allocation7 + $0xe8] sm:$0xf]
    %v441 = vld [vmem:[#allocation7 + $0xec] sm:$0xf]
    %v442 = vld [vmem:[#allocation7 + $0xf0] sm:$0xf]
    %v443 = vld [vmem:[#allocation7 + $0xf4] sm:$0xf]
    %v444 = vld [vmem:[#allocation7 + $0xf8] sm:$0xf]
    %v445 = vld [vmem:[#allocation7 + $0xfc] sm:$0xf]
    %v510 = vunpack.c.l.b16 %v382
    %v511 = vunpack.c.l.b16 %v383
    %v512 = vunpack.c.l.b16 %v384
    %v513 = vunpack.c.l.b16 %v385
    %v514 = vunpack.c.l.b16 %v386
    %v515 = vunpack.c.l.b16 %v387
    %v516 = vunpack.c.l.b16 %v388
    %v517 = vunpack.c.l.b16 %v389
    %v518 = vunpack.c.l.b16 %v390
    %v519 = vunpack.c.l.b16 %v391
    %v520 = vunpack.c.l.b16 %v392
    %v521 = vunpack.c.l.b16 %v393
    %v522 = vunpack.c.l.b16 %v394
    %v523 = vunpack.c.l.b16 %v395
    %v524 = vunpack.c.l.b16 %v396
    %v525 = vunpack.c.l.b16 %v397
    %v526 = vunpack.c.l.b16 %v398
    %v527 = vunpack.c.l.b16 %v399
    %v528 = vunpack.c.l.b16 %v400
    %v529 = vunpack.c.l.b16 %v401
    %v530 = vunpack.c.l.b16 %v402
    %v531 = vunpack.c.l.b16 %v403
    %v532 = vunpack.c.l.b16 %v404
    %v533 = vunpack.c.l.b16 %v405
    %v534 = vunpack.c.l.b16 %v406
    %v535 = vunpack.c.l.b16 %v407
    %v536 = vunpack.c.l.b16 %v408
    %v537 = vunpack.c.l.b16 %v409
    %v538 = vunpack.c.l.b16 %v410
    %v539 = vunpack.c.l.b16 %v411
    %v540 = vunpack.c.l.b16 %v412
    %v541 = vunpack.c.l.b16 %v413
    %v542 = vunpack.c.l.b16 %v414
    %v543 = vunpack.c.l.b16 %v415
    %v544 = vunpack.c.l.b16 %v416
    %v545 = vunpack.c.l.b16 %v417
    %v546 = vunpack.c.l.b16 %v418
    %v547 = vunpack.c.l.b16 %v419
    %v548 = vunpack.c.l.b16 %v420
    %v549 = vunpack.c.l.b16 %v421
    %v550 = vunpack.c.l.b16 %v422
    %v551 = vunpack.c.l.b16 %v423
    %v552 = vunpack.c.l.b16 %v424
    %v553 = vunpack.c.l.b16 %v425
    %v554 = vunpack.c.l.b16 %v426
    %v555 = vunpack.c.l.b16 %v427
    %v556 = vunpack.c.l.b16 %v428
    %v557 = vunpack.c.l.b16 %v429
    %v558 = vunpack.c.l.b16 %v430
    %v559 = vunpack.c.l.b16 %v431
    %v560 = vunpack.c.l.b16 %v432
    %v561 = vunpack.c.l.b16 %v433
    %v562 = vunpack.c.l.b16 %v434
    %v563 = vunpack.c.l.b16 %v435
    %v564 = vunpack.c.l.b16 %v436
    %v565 = vunpack.c.l.b16 %v437
    %v566 = vunpack.c.l.b16 %v438
    %v567 = vunpack.c.l.b16 %v439
    %v568 = vunpack.c.l.b16 %v440
    %v569 = vunpack.c.l.b16 %v441
    %v570 = vunpack.c.l.b16 %v442
    %v571 = vunpack.c.l.b16 %v443
    %v572 = vunpack.c.l.b16 %v444
    %v573 = vunpack.c.l.b16 %v445
    %v574 = vpack.c.b16 %v511, %v510
    %v575 = vpack.c.b16 %v513, %v512
    %v576 = vpack.c.b16 %v515, %v514
    %v577 = vpack.c.b16 %v517, %v516
    %v578 = vpack.c.b16 %v519, %v518
    %v579 = vpack.c.b16 %v521, %v520
    %v580 = vpack.c.b16 %v523, %v522
    %v581 = vpack.c.b16 %v525, %v524
    %v582 = vpack.c.b16 %v527, %v526
    %v583 = vpack.c.b16 %v529, %v528
    %v584 = vpack.c.b16 %v531, %v530
    %v585 = vpack.c.b16 %v533, %v532
    %v586 = vpack.c.b16 %v535, %v534
    %v587 = vpack.c.b16 %v537, %v536
    %v588 = vpack.c.b16 %v539, %v538
    %v589 = vpack.c.b16 %v541, %v540
    %v590 = vpack.c.b16 %v543, %v542
    %v591 = vpack.c.b16 %v545, %v544
    %v592 = vpack.c.b16 %v547, %v546
    %v593 = vpack.c.b16 %v549, %v548
    %v594 = vpack.c.b16 %v551, %v550
    %v595 = vpack.c.b16 %v553, %v552
    %v596 = vpack.c.b16 %v555, %v554
    %v597 = vpack.c.b16 %v557, %v556
    %v598 = vpack.c.b16 %v559, %v558
    %v599 = vpack.c.b16 %v561, %v560
    %v600 = vpack.c.b16 %v563, %v562
    %v601 = vpack.c.b16 %v565, %v564
    %v602 = vpack.c.b16 %v567, %v566
    %v603 = vpack.c.b16 %v569, %v568
    %v604 = vpack.c.b16 %v571, %v570
    %v605 = vpack.c.b16 %v573, %v572
    %638 = vmatprep.subr.bf16.mxu0 0
    %639 = vmatpush1.bf16.msra.mxu0 %v581
    %640 = vmatprep.subr.bf16.mxu0 0
    %641 = vmatpush1.bf16.msra.mxu0 %v580
    %642 = vmatprep.subr.bf16.mxu0 0
    %643 = vmatpush1.bf16.msra.mxu0 %v579
    %644 = vmatprep.subr.bf16.mxu0 0
    %645 = vmatpush1.bf16.msra.mxu0 %v578
    %646 = vmatprep.subr.bf16.mxu0 0
    %647 = vmatpush1.bf16.msra.mxu0 %v577
    %648 = vmatprep.subr.bf16.mxu0 0
    %649 = vmatpush1.bf16.msra.mxu0 %v576
    %650 = vmatprep.subr.bf16.mxu0 0
    %651 = vmatpush1.bf16.msra.mxu0 %v575
    %652 = vmatprep.subr.bf16.mxu0 0
    %653 = vmatpush1.bf16.msra.mxu0 %v574
    %654 = vmatprep.subr.bf16.mxu0 0
    %655 = vmatpush2.bf16.msra.mxu0 %v589
    %656 = vmatprep.subr.bf16.mxu0 0
    %657 = vmatpush2.bf16.msra.mxu0 %v588
    %658 = vmatprep.subr.bf16.mxu0 0
    %659 = vmatpush2.bf16.msra.mxu0 %v587
    %660 = vmatprep.subr.bf16.mxu0 0
    %661 = vmatpush2.bf16.msra.mxu0 %v586
    %662 = vmatprep.subr.bf16.mxu0 0
    %663 = vmatpush2.bf16.msra.mxu0 %v585
    %664 = vmatprep.subr.bf16.mxu0 0
    %665 = vmatpush2.bf16.msra.mxu0 %v584
    %666 = vmatprep.subr.bf16.mxu0 0
    %667 = vmatpush2.bf16.msra.mxu0 %v583
    %668 = vmatprep.subr.bf16.mxu0 0
    %669 = vmatpush2.bf16.msra.mxu0 %v582
    %670 = vmatprep.mubr.bf16.mxu0 %v379
    %671 = vmatmul.mubr.bf16.gmra.mxu0 %v378
    %v672 = vpop.f32.mrf.mxu0
    %v673 = vadd.f32 0.0, %v672
    %v674 = vpop.f32.mrf.mxu0
    %v675 = vpop.f32.mrf.mxu0
    %v676 = vadd.f32 0.0, %v675
    %v677 = vpop.f32.mrf.mxu0
    %678 = vdwg.mxu0
    %679 = vmatprep.subr.bf16.mxu0 0
    %680 = vmatpush1.bf16.msra.mxu0 %v597
    %681 = vmatprep.subr.bf16.mxu0 0
    %682 = vmatpush1.bf16.msra.mxu0 %v596
    %683 = vmatprep.subr.bf16.mxu0 0
    %684 = vmatpush1.bf16.msra.mxu0 %v595
    %685 = vmatprep.subr.bf16.mxu0 0
    %686 = vmatpush1.bf16.msra.mxu0 %v594
    %687 = vmatprep.subr.bf16.mxu0 0
    %688 = vmatpush1.bf16.msra.mxu0 %v593
    %689 = vmatprep.subr.bf16.mxu0 0
    %690 = vmatpush1.bf16.msra.mxu0 %v592
    %691 = vmatprep.subr.bf16.mxu0 0
    %692 = vmatpush1.bf16.msra.mxu0 %v591
    %693 = vmatprep.subr.bf16.mxu0 0
    %694 = vmatpush1.bf16.msra.mxu0 %v590
    %695 = vmatprep.subr.bf16.mxu0 0
    %696 = vmatpush2.bf16.msra.mxu0 %v605
    %697 = vmatprep.subr.bf16.mxu0 0
    %698 = vmatpush2.bf16.msra.mxu0 %v604
    %699 = vmatprep.subr.bf16.mxu0 0
    %700 = vmatpush2.bf16.msra.mxu0 %v603
    %701 = vmatprep.subr.bf16.mxu0 0
    %702 = vmatpush2.bf16.msra.mxu0 %v602
    %703 = vmatprep.subr.bf16.mxu0 0
    %704 = vmatpush2.bf16.msra.mxu0 %v601
    %705 = vmatprep.subr.bf16.mxu0 0
    %706 = vmatpush2.bf16.msra.mxu0 %v600
    %707 = vmatprep.subr.bf16.mxu0 0
    %708 = vmatpush2.bf16.msra.mxu0 %v599
    %709 = vmatprep.subr.bf16.mxu0 0
    %710 = vmatpush2.bf16.msra.mxu0 %v598
    %711 = vmatprep.mubr.bf16.mxu0 %v381
    %712 = vmatmul.mubr.bf16.gmra.mxu0 %v380
    %v713 = vpop.f32.mrf.mxu0
    %v714 = vadd.f32 %v673, %v713
    %v715 = vpop.f32.mrf.mxu0
    %v716 = vpop.f32.mrf.mxu0
    %v717 = vadd.f32 %v676, %v716
    %v718 = vpop.f32.mrf.mxu0
    %719 = vdwg.mxu0
    %720 = vst [vmem:[#allocation8] sm:$0xff] %v714
    %721 = vst [vmem:[#allocation8 + $0x8] sm:$0xff] %v717
    // Predicated region
    $region26: #{tpu_custom_call.1} parent=1 // pred_check
      _
    $region27: #{tpu_custom_call.1} parent=1 // pred_check_branch
      %723 = sbr.rel (0) target = $region29
    $region28: #{tpu_custom_call.1} parent=1 // pred_region
      %s725 = ssub.s32 256, 256
      %726 = vsyncadd [#allocation4], %s725
      %s727 = sshll.u32 [#allocation8], 4
      %s728 = int_to_ptr.vmem [resolvable:$true] %s727
      %733 = dma.vmem_to_hbm [thread:$0]  %s728, 256, %s3, [#allocation4], 128, 128, 8
    $region29: #{tpu_custom_call.1} parent=1 // pred_fallthru
      _
    // Predicated region
    $region30: #{tpu_custom_call.1} parent=1 // pred_check
      _
    $region31: #{tpu_custom_call.1} parent=1 // pred_check_branch
      %735 = sbr.rel (0) target = $region33
    $region32: #{tpu_custom_call.1} parent=1 // pred_region
      %736 = dma.done [#allocation4], 256
    $region33: #{tpu_custom_call.1} parent=1 // pred_fallthru
      _
    %737 = vsyncpa [#allocation3], 1
    %738 = vsyncpa [#allocation6], 1
    %739 = vsyncpa [#allocation4], 1

</llo_original>
